<compile_context>
chip_gen: v7x
topology: tpu7x:2x2x1
jax: 0.10.0
libtpu: 0.0.40
codegen_flags: <defaults>
</compile_context>

<pallas_src>
import jax
import jax.numpy as jnp
from jax.experimental import pallas as pl
from jax.experimental.pallas import tpu as pltpu

LANE = 128     # vreg lane width  (last dim)
SUBLANE = 8    # vreg sublane height (second-to-last dim, f32)


def _round_up(n, m):
    return ((n + m - 1) // m) * m


def _pad2d(a, rows, cols):
    return jnp.pad(a, ((0, rows - a.shape[0]), (0, cols - a.shape[1])))


# ----------------------------- Fused Pallas kernel ------------------------------

def _fused_resnet_kernel(alphas_ref, x_ref, *refs):
    """alphas: SMEM [n_prelu]; x: VMEM [TM, Din_p] f32;
    refs: (w0,b0, w1,b1, ..., o_ref) with w* bf16, b* f32, o f32.

    Layers 0..n-2 are Linear+PReLU, the last layer is Linear only (policy output).
    The layer loop is a Python loop -> fully unrolled at trace time; activations
    never leave vregs/VMEM.  Matmuls run bf16 x bf16 -> f32 on the MXU.
    """
    o_ref = refs[-1]
    wbs = refs[:-1]
    n_layers = len(wbs) // 2

    h = x_ref[...]                                       # f32 activations
    for i in range(n_layers):
        w = wbs[2 * i][...]                              # bf16 [K, N]
        b = wbs[2 * i + 1][...]                          # f32  [1, N]
        y = jnp.dot(h.astype(jnp.bfloat16), w,
                    preferred_element_type=jnp.float32) + b
        if i < n_layers - 1:
            alpha = alphas_ref[i]                        # scalar from SMEM, per layer
            y = jnp.where(y > 0, y, alpha * y)
        h = y
    o_ref[...] = h


# ------------------------------- Forward wrapper ---------------------------------

def resnet_forward(params, x, *, batch_tile=256):
    """Runs the whole network in a single fused Pallas kernel.

    x: [B, number_of_inputs].  The batch is tiled along a parallel grid axis of
    `batch_tile` rows; weights are loaded once per call and revisited across tiles.
    """
    prelu_layers = [params["start"]] + list(params["blocks"]) + [params["policy1"]]
    final_w, final_b = params["policy2"]

    B, in_f = x.shape
    action_size = final_w.shape[1]

    # Batch tiling: small batches collapse to a single sublane-aligned tile,
    # large batches get multiple `batch_tile`-row tiles (parallel across TCs).
    TM = min(batch_tile, _round_up(max(B, SUBLANE), SUBLANE))
    Bp = _round_up(max(B, TM), TM)
    n_tiles = Bp // TM

    in_p = _round_up(in_f, LANE)
    x_p = _pad2d(x.astype(jnp.float32), Bp, in_p)

    # Stack all PReLU slopes into one scalar-prefetched SMEM array.
    alphas = jnp.concatenate(
        [a.reshape(-1) for (_, _, a) in prelu_layers]).astype(jnp.float32)

    # Zero-pad every weight/bias to lane-dense (multiple-of-128) feature dims.
    # Weights are shipped bf16 (MXU inputs), biases stay f32 (VPU add).
    wb_inputs = []
    flops = 0
    cur_in = in_p
    for (w, b, _) in prelu_layers:
        out_p = _round_up(w.shape[1], LANE)
        wb_inputs.append(_pad2d(w, cur_in, out_p).astype(jnp.bfloat16))
        wb_inputs.append(_pad2d(b, 1, out_p).astype(jnp.float32))
        flops += 2 * Bp * cur_in * out_p
        cur_in = out_p
    out_pf = _round_up(action_size, LANE)
    wb_inputs.append(_pad2d(final_w, cur_in, out_pf).astype(jnp.bfloat16))
    wb_inputs.append(_pad2d(final_b, 1, out_pf).astype(jnp.float32))
    flops += 2 * Bp * cur_in * out_pf

    bytes_accessed = (
        x_p.size * 4
        + sum(int(a.size) * a.dtype.itemsize for a in wb_inputs)
        + alphas.size * 4
        + Bp * out_pf * 4
    )

    # index_maps receive (grid_i, alphas_ref) because of num_scalar_prefetch=1.
    def _const_map(i, alphas_ref):
        return (0, 0)

    in_specs = (
        [pl.BlockSpec((TM, in_p), lambda i, alphas_ref: (i, 0))]          # x tile
        + [pl.BlockSpec(a.shape, _const_map) for a in wb_inputs]          # W / b (loaded once)
    )
    out_specs = pl.BlockSpec((TM, out_pf), lambda i, alphas_ref: (i, 0))

    grid_spec = pltpu.PrefetchScalarGridSpec(
        num_scalar_prefetch=1,
        grid=(n_tiles,),
        in_specs=in_specs,
        out_specs=out_specs,
    )

    out_p = pl.pallas_call(
        _fused_resnet_kernel,
        out_shape=jax.ShapeDtypeStruct((Bp, out_pf), jnp.float32),
        grid_spec=grid_spec,
        compiler_params=pltpu.CompilerParams(
            dimension_semantics=("parallel",),           # batch tiles -> 2 TCs on v7x
            vmem_limit_bytes=32 * 1024 * 1024,           # explicit budget (v7x-safe)
        ),
        cost_estimate=pl.CostEstimate(
            flops=flops, transcendentals=0, bytes_accessed=bytes_accessed
        ),
    )(alphas, x_p, *wb_inputs)

    # Slice the lane-dense padded output down to the real policy logits.
    return out_p[:B, :action_size]


# --------------------------- Parameter construction -------------------------

def _init_linear(key, in_f, out_f):
    """Mimics torch.nn.Linear default init (U(-1/sqrt(fan_in), 1/sqrt(fan_in)))."""
    kw, kb = jax.random.split(key)
    bound = 1.0 / jnp.sqrt(jnp.float32(in_f))
    w = jax.random.uniform(kw, (in_f, out_f), jnp.float32, -bound, bound)
    b = jax.random.uniform(kb, (1, out_f), jnp.float32, -bound, bound)
    return w, b


def make_resnet_params(key, number_of_inputs, num_hidden, num_res_blocks, action_size):
    params = {}
    keys = jax.random.split(key, num_res_blocks + 3)
    prelu0 = jnp.array([0.25], jnp.float32)  # nn.PReLU default init

    params["start"] = (*_init_linear(keys[0], number_of_inputs, num_hidden), prelu0)
    params["blocks"] = []
    for i in range(num_res_blocks):
        params["blocks"].append(
            (*_init_linear(keys[1 + i], num_hidden, num_hidden), prelu0)
        )
    params["policy1"] = (*_init_linear(keys[-2], num_hidden, num_hidden // 2), prelu0)
    params["policy2"] = _init_linear(keys[-1], num_hidden // 2, action_size)
    return params


# ----------------------------- Pure-JAX reference ---------------------------

def resnet_forward_ref(params, x, matmul_dtype=jnp.float32):
    """Reference forward.  With matmul_dtype=bf16 it mirrors the kernel's MXU
    numerics (bf16 inputs, f32 accumulate); with f32 it is the exact module math.
    Note: the reference ResBlock has NO residual add — it is just Linear+PReLU,
    matching the PyTorch module."""
    def lin(h, w, b):
        return jnp.dot(h.astype(matmul_dtype), w.astype(matmul_dtype),
                       preferred_element_type=jnp.float32) + b

    def lin_prelu(h, w, b, a):
        y = lin(h, w, b)
        return jnp.where(y > 0, y, a[0] * y)

    w, b, a = params["start"]
    h = lin_prelu(x, w, b, a)
    for (w, b, a) in params["blocks"]:
        h = lin_prelu(h, w, b, a)
    w, b, a = params["policy1"]
    h = lin_prelu(h, w, b, a)
    w, b = params["policy2"]
    return lin(h, w, b)


# ----------------------------------- Main ------------------------------------

if __name__ == "__main__":
    # Small shapes consistent with the module's forward:
    batch = 4
    number_of_inputs = 16
    num_hidden = 32
    num_res_blocks = 2
    action_size = 8   # stands in for system.action_size

    key = jax.random.PRNGKey(0)
    k_params, k_x, k_big = jax.random.split(key, 3)

    params = make_resnet_params(
        k_params, number_of_inputs, num_hidden, num_res_blocks, action_size
    )
    x = jax.random.normal(k_x, (batch, number_of_inputs), jnp.float32)

    fwd = jax.jit(resnet_forward)

    # Small batch (single grid tile).
    policy = jax.block_until_ready(fwd(params, x))
    assert policy.shape == (batch, action_size)
    ref_bf16 = resnet_forward_ref(params, x, matmul_dtype=jnp.bfloat16)
    ref_f32 = resnet_forward_ref(params, x, matmul_dtype=jnp.float32)
    assert jnp.allclose(policy, ref_bf16, atol=1e-4, rtol=1e-4), "mismatch vs bf16 ref"
    assert jnp.allclose(policy, ref_f32, atol=5e-2, rtol=5e-2), "mismatch vs f32 ref"

    # Larger batch: exercises the parallel batch grid (2 tiles x 256 rows),
    # amortizing launch/DMA latency as recommended by the perf review.
    big_batch = 512
    x_big = jax.random.normal(k_big, (big_batch, number_of_inputs), jnp.float32)
    policy_big = jax.block_until_ready(fwd(params, x_big))
    assert policy_big.shape == (big_batch, action_size)
    ref_big = resnet_forward_ref(params, x_big, matmul_dtype=jnp.bfloat16)
    assert jnp.allclose(policy_big, ref_big, atol=1e-4, rtol=1e-4), "mismatch (big batch)"

    print("KERNEL_OK")
</pallas_src>

<mosaic_0001>
module attributes {stable_mosaic.version = 11 : i64} {
  func.func @_fused_resnet_kernel(%arg0: i32, %arg1: memref<4xf32, #tpu.memory_space<smem>>, %arg2: memref<8x128xf32, #tpu.memory_space<vmem>>, %arg3: memref<128x128xbf16, #tpu.memory_space<vmem>>, %arg4: memref<1x128xf32, #tpu.memory_space<vmem>>, %arg5: memref<128x128xbf16, #tpu.memory_space<vmem>>, %arg6: memref<1x128xf32, #tpu.memory_space<vmem>>, %arg7: memref<128x128xbf16, #tpu.memory_space<vmem>>, %arg8: memref<1x128xf32, #tpu.memory_space<vmem>>, %arg9: memref<128x128xbf16, #tpu.memory_space<vmem>>, %arg10: memref<1x128xf32, #tpu.memory_space<vmem>>, %arg11: memref<128x128xbf16, #tpu.memory_space<vmem>>, %arg12: memref<1x128xf32, #tpu.memory_space<vmem>>, %arg13: memref<8x128xf32, #tpu.memory_space<vmem>>) attributes {dimension_semantics = [#tpu.dimension_semantics<parallel>], iteration_bounds = array<i64: 1>, scalar_prefetch = 1 : i64, scratch_operands = 0 : i64, tpu.core_type = #tpu.core_type<tc>, window_params = [{transform_indices = @transform_0, window_bounds = array<i64: 8, 128>}, {pipeline_mode = #tpu.pipeline_mode<synchronous>, transform_indices = @transform_1, window_bounds = array<i64: 128, 128>}, {pipeline_mode = #tpu.pipeline_mode<synchronous>, transform_indices = @transform_2, window_bounds = array<i64: 1, 128>}, {pipeline_mode = #tpu.pipeline_mode<synchronous>, transform_indices = @transform_3, window_bounds = array<i64: 128, 128>}, {pipeline_mode = #tpu.pipeline_mode<synchronous>, transform_indices = @transform_4, window_bounds = array<i64: 1, 128>}, {pipeline_mode = #tpu.pipeline_mode<synchronous>, transform_indices = @transform_5, window_bounds = array<i64: 128, 128>}, {pipeline_mode = #tpu.pipeline_mode<synchronous>, transform_indices = @transform_6, window_bounds = array<i64: 1, 128>}, {pipeline_mode = #tpu.pipeline_mode<synchronous>, transform_indices = @transform_7, window_bounds = array<i64: 128, 128>}, {pipeline_mode = #tpu.pipeline_mode<synchronous>, transform_indices = @transform_8, window_bounds = array<i64: 1, 128>}, {pipeline_mode = #tpu.pipeline_mode<synchronous>, transform_indices = @transform_9, window_bounds = array<i64: 128, 128>}, {pipeline_mode = #tpu.pipeline_mode<synchronous>, transform_indices = @transform_10, window_bounds = array<i64: 1, 128>}, {transform_indices = @transform_11, window_bounds = array<i64: 8, 128>}]} {
    %c0 = arith.constant 0 : index
    %c0_0 = arith.constant 0 : index
    %0 = vector.load %arg2[%c0, %c0_0] : memref<8x128xf32, #tpu.memory_space<vmem>>, vector<8x128xf32>
    %c0_1 = arith.constant 0 : index
    %c0_2 = arith.constant 0 : index
    %1 = vector.load %arg3[%c0_1, %c0_2] : memref<128x128xbf16, #tpu.memory_space<vmem>>, vector<128x128xbf16>
    %c0_3 = arith.constant 0 : index
    %c0_4 = arith.constant 0 : index
    %2 = vector.load %arg4[%c0_3, %c0_4] : memref<1x128xf32, #tpu.memory_space<vmem>>, vector<1x128xf32>
    %3 = arith.truncf %0 : vector<8x128xf32> to vector<8x128xbf16>
    %cst = arith.constant dense<0.000000e+00> : vector<8x128xf32>
    %4 = tpu.matmul %3, %1, %cst {dimension_numbers = #tpu.dot_dimension_numbers<[1], [0], [0], [1], [0, 0, 1, 1], [], []>} : vector<8x128xbf16>, vector<128x128xbf16>, vector<8x128xf32> -> vector<8x128xf32>
    %5 = vector.broadcast %2 : vector<1x128xf32> to vector<8x128xf32>
    %6 = arith.addf %4, %5 : vector<8x128xf32>
    %c0_5 = arith.constant 0 : index
    %7 = memref.load %arg1[%c0_5] : memref<4xf32, #tpu.memory_space<smem>>
    %cst_6 = arith.constant 0.000000e+00 : f32
    %8 = vector.broadcast %cst_6 : f32 to vector<8x128xf32>
    %9 = arith.cmpf ogt, %6, %8 : vector<8x128xf32>
    %10 = vector.broadcast %7 : f32 to vector<8x128xf32>
    %11 = arith.mulf %10, %6 : vector<8x128xf32>
    %12 = arith.select %9, %6, %11 : vector<8x128xi1>, vector<8x128xf32>
    %c0_7 = arith.constant 0 : index
    %c0_8 = arith.constant 0 : index
    %13 = vector.load %arg5[%c0_7, %c0_8] : memref<128x128xbf16, #tpu.memory_space<vmem>>, vector<128x128xbf16>
    %c0_9 = arith.constant 0 : index
    %c0_10 = arith.constant 0 : index
    %14 = vector.load %arg6[%c0_9, %c0_10] : memref<1x128xf32, #tpu.memory_space<vmem>>, vector<1x128xf32>
    %15 = arith.truncf %12 : vector<8x128xf32> to vector<8x128xbf16>
    %cst_11 = arith.constant dense<0.000000e+00> : vector<8x128xf32>
    %16 = tpu.matmul %15, %13, %cst_11 {dimension_numbers = #tpu.dot_dimension_numbers<[1], [0], [0], [1], [0, 0, 1, 1], [], []>} : vector<8x128xbf16>, vector<128x128xbf16>, vector<8x128xf32> -> vector<8x128xf32>
    %17 = vector.broadcast %14 : vector<1x128xf32> to vector<8x128xf32>
    %18 = arith.addf %16, %17 : vector<8x128xf32>
    %c1 = arith.constant 1 : index
    %19 = memref.load %arg1[%c1] : memref<4xf32, #tpu.memory_space<smem>>
    %cst_12 = arith.constant 0.000000e+00 : f32
    %20 = vector.broadcast %cst_12 : f32 to vector<8x128xf32>
    %21 = arith.cmpf ogt, %18, %20 : vector<8x128xf32>
    %22 = vector.broadcast %19 : f32 to vector<8x128xf32>
    %23 = arith.mulf %22, %18 : vector<8x128xf32>
    %24 = arith.select %21, %18, %23 : vector<8x128xi1>, vector<8x128xf32>
    %c0_13 = arith.constant 0 : index
    %c0_14 = arith.constant 0 : index
    %25 = vector.load %arg7[%c0_13, %c0_14] : memref<128x128xbf16, #tpu.memory_space<vmem>>, vector<128x128xbf16>
    %c0_15 = arith.constant 0 : index
    %c0_16 = arith.constant 0 : index
    %26 = vector.load %arg8[%c0_15, %c0_16] : memref<1x128xf32, #tpu.memory_space<vmem>>, vector<1x128xf32>
    %27 = arith.truncf %24 : vector<8x128xf32> to vector<8x128xbf16>
    %cst_17 = arith.constant dense<0.000000e+00> : vector<8x128xf32>
    %28 = tpu.matmul %27, %25, %cst_17 {dimension_numbers = #tpu.dot_dimension_numbers<[1], [0], [0], [1], [0, 0, 1, 1], [], []>} : vector<8x128xbf16>, vector<128x128xbf16>, vector<8x128xf32> -> vector<8x128xf32>
    %29 = vector.broadcast %26 : vector<1x128xf32> to vector<8x128xf32>
    %30 = arith.addf %28, %29 : vector<8x128xf32>
    %c2 = arith.constant 2 : index
    %31 = memref.load %arg1[%c2] : memref<4xf32, #tpu.memory_space<smem>>
    %cst_18 = arith.constant 0.000000e+00 : f32
    %32 = vector.broadcast %cst_18 : f32 to vector<8x128xf32>
    %33 = arith.cmpf ogt, %30, %32 : vector<8x128xf32>
    %34 = vector.broadcast %31 : f32 to vector<8x128xf32>
    %35 = arith.mulf %34, %30 : vector<8x128xf32>
    %36 = arith.select %33, %30, %35 : vector<8x128xi1>, vector<8x128xf32>
    %c0_19 = arith.constant 0 : index
    %c0_20 = arith.constant 0 : index
    %37 = vector.load %arg9[%c0_19, %c0_20] : memref<128x128xbf16, #tpu.memory_space<vmem>>, vector<128x128xbf16>
    %c0_21 = arith.constant 0 : index
    %c0_22 = arith.constant 0 : index
    %38 = vector.load %arg10[%c0_21, %c0_22] : memref<1x128xf32, #tpu.memory_space<vmem>>, vector<1x128xf32>
    %39 = arith.truncf %36 : vector<8x128xf32> to vector<8x128xbf16>
    %cst_23 = arith.constant dense<0.000000e+00> : vector<8x128xf32>
    %40 = tpu.matmul %39, %37, %cst_23 {dimension_numbers = #tpu.dot_dimension_numbers<[1], [0], [0], [1], [0, 0, 1, 1], [], []>} : vector<8x128xbf16>, vector<128x128xbf16>, vector<8x128xf32> -> vector<8x128xf32>
    %41 = vector.broadcast %38 : vector<1x128xf32> to vector<8x128xf32>
    %42 = arith.addf %40, %41 : vector<8x128xf32>
    %c3 = arith.constant 3 : index
    %43 = memref.load %arg1[%c3] : memref<4xf32, #tpu.memory_space<smem>>
    %cst_24 = arith.constant 0.000000e+00 : f32
    %44 = vector.broadcast %cst_24 : f32 to vector<8x128xf32>
    %45 = arith.cmpf ogt, %42, %44 : vector<8x128xf32>
    %46 = vector.broadcast %43 : f32 to vector<8x128xf32>
    %47 = arith.mulf %46, %42 : vector<8x128xf32>
    %48 = arith.select %45, %42, %47 : vector<8x128xi1>, vector<8x128xf32>
    %c0_25 = arith.constant 0 : index
    %c0_26 = arith.constant 0 : index
    %49 = vector.load %arg11[%c0_25, %c0_26] : memref<128x128xbf16, #tpu.memory_space<vmem>>, vector<128x128xbf16>
    %c0_27 = arith.constant 0 : index
    %c0_28 = arith.constant 0 : index
    %50 = vector.load %arg12[%c0_27, %c0_28] : memref<1x128xf32, #tpu.memory_space<vmem>>, vector<1x128xf32>
    %51 = arith.truncf %48 : vector<8x128xf32> to vector<8x128xbf16>
    %cst_29 = arith.constant dense<0.000000e+00> : vector<8x128xf32>
    %52 = tpu.matmul %51, %49, %cst_29 {dimension_numbers = #tpu.dot_dimension_numbers<[1], [0], [0], [1], [0, 0, 1, 1], [], []>} : vector<8x128xbf16>, vector<128x128xbf16>, vector<8x128xf32> -> vector<8x128xf32>
    %53 = vector.broadcast %50 : vector<1x128xf32> to vector<8x128xf32>
    %54 = arith.addf %52, %53 : vector<8x128xf32>
    %c0_30 = arith.constant 0 : index
    %c0_31 = arith.constant 0 : index
    %55 = vector.load %arg13[%c0_30, %c0_31] : memref<8x128xf32, #tpu.memory_space<vmem>>, vector<8x128xf32>
    tpu.vector_store %arg13[%c0_30, %c0_31], %54 {strides = array<i32>} : memref<8x128xf32, #tpu.memory_space<vmem>>, vector<8x128xf32>,
    return
  }
  func.func @transform_0(%arg0: i32, %arg1: memref<4xf32, #tpu.memory_space<smem>>) -> (i32, i32) {
    %c0_i32 = arith.constant 0 : i32
    %c0_i32_0 = arith.constant 0 : i32
    return %arg0, %c0_i32 : i32, i32
  }
  func.func @transform_1(%arg0: i32, %arg1: memref<4xf32, #tpu.memory_space<smem>>) -> (i32, i32) {
    %c0_i32 = arith.constant 0 : i32
    %c0_i32_0 = arith.constant 0 : i32
    %c0_i32_1 = arith.constant 0 : i32
    return %c0_i32, %c0_i32_0 : i32, i32
  }
  func.func @transform_2(%arg0: i32, %arg1: memref<4xf32, #tpu.memory_space<smem>>) -> (i32, i32) {
    %c0_i32 = arith.constant 0 : i32
    %c0_i32_0 = arith.constant 0 : i32
    %c0_i32_1 = arith.constant 0 : i32
    return %c0_i32, %c0_i32_0 : i32, i32
  }
  func.func @transform_3(%arg0: i32, %arg1: memref<4xf32, #tpu.memory_space<smem>>) -> (i32, i32) {
    %c0_i32 = arith.constant 0 : i32
    %c0_i32_0 = arith.constant 0 : i32
    %c0_i32_1 = arith.constant 0 : i32
    return %c0_i32, %c0_i32_0 : i32, i32
  }
  func.func @transform_4(%arg0: i32, %arg1: memref<4xf32, #tpu.memory_space<smem>>) -> (i32, i32) {
    %c0_i32 = arith.constant 0 : i32
    %c0_i32_0 = arith.constant 0 : i32
    %c0_i32_1 = arith.constant 0 : i32
    return %c0_i32, %c0_i32_0 : i32, i32
  }
  func.func @transform_5(%arg0: i32, %arg1: memref<4xf32, #tpu.memory_space<smem>>) -> (i32, i32) {
    %c0_i32 = arith.constant 0 : i32
    %c0_i32_0 = arith.constant 0 : i32
    %c0_i32_1 = arith.constant 0 : i32
    return %c0_i32, %c0_i32_0 : i32, i32
  }
  func.func @transform_6(%arg0: i32, %arg1: memref<4xf32, #tpu.memory_space<smem>>) -> (i32, i32) {
    %c0_i32 = arith.constant 0 : i32
    %c0_i32_0 = arith.constant 0 : i32
    %c0_i32_1 = arith.constant 0 : i32
    return %c0_i32, %c0_i32_0 : i32, i32
  }
  func.func @transform_7(%arg0: i32, %arg1: memref<4xf32, #tpu.memory_space<smem>>) -> (i32, i32) {
    %c0_i32 = arith.constant 0 : i32
    %c0_i32_0 = arith.constant 0 : i32
    %c0_i32_1 = arith.constant 0 : i32
    return %c0_i32, %c0_i32_0 : i32, i32
  }
  func.func @transform_8(%arg0: i32, %arg1: memref<4xf32, #tpu.memory_space<smem>>) -> (i32, i32) {
    %c0_i32 = arith.constant 0 : i32
    %c0_i32_0 = arith.constant 0 : i32
    %c0_i32_1 = arith.constant 0 : i32
    return %c0_i32, %c0_i32_0 : i32, i32
  }
  func.func @transform_9(%arg0: i32, %arg1: memref<4xf32, #tpu.memory_space<smem>>) -> (i32, i32) {
    %c0_i32 = arith.constant 0 : i32
    %c0_i32_0 = arith.constant 0 : i32
    %c0_i32_1 = arith.constant 0 : i32
    return %c0_i32, %c0_i32_0 : i32, i32
  }
  func.func @transform_10(%arg0: i32, %arg1: memref<4xf32, #tpu.memory_space<smem>>) -> (i32, i32) {
    %c0_i32 = arith.constant 0 : i32
    %c0_i32_0 = arith.constant 0 : i32
    %c0_i32_1 = arith.constant 0 : i32
    return %c0_i32, %c0_i32_0 : i32, i32
  }
  func.func @transform_11(%arg0: i32, %arg1: memref<4xf32, #tpu.memory_space<smem>>) -> (i32, i32) {
    %c0_i32 = arith.constant 0 : i32
    %c0_i32_0 = arith.constant 0 : i32
    return %arg0, %c0_i32 : i32, i32
  }
}

</mosaic_0001>

<llo_original>
// kernel: resnet_forward.1
$region0: #{resnet_forward.1}
  #allocation0 [shape = 'u32[]', space=smem, size = 0x4, offset = 0x4, fixed_abs, tag = 'smem constant byte address 0x4 - core index']
  #allocation1 [shape = 'u32[144,128]{1,0:T(1,128)}', space=vmem, size = 0x12000, scoped, tag = 'internal scratch']
  #allocation2 [shape = 's32[1]{0}', space=sflag, size = 0x4, scoped, tag = 'scoped memory for resnet_forward.1']
  #allocation3 [shape = 'u8[512]{0}', space=smem, size = 0x200, scoped, tag = 'prefetched SMEM operand 0']
  %s0 = inlined_call_operand.vmem [shape: f32[4], index: 0, kind: input, shape index: {}]
  %s1 = inlined_call_operand.vmem [shape: f32[8,128], index: 1, kind: input, shape index: {}]
  %s2 = inlined_call_operand.vmem [shape: bf16[128,128], index: 2, kind: input, shape index: {}]
  %s3 = inlined_call_operand.vmem [shape: f32[1,128], index: 3, kind: input, shape index: {}]
  %s4 = inlined_call_operand.vmem [shape: bf16[128,128], index: 4, kind: input, shape index: {}]
  %s5 = inlined_call_operand.vmem [shape: f32[1,128], index: 5, kind: input, shape index: {}]
  %s6 = inlined_call_operand.vmem [shape: bf16[128,128], index: 6, kind: input, shape index: {}]
  %s7 = inlined_call_operand.vmem [shape: f32[1,128], index: 7, kind: input, shape index: {}]
  %s8 = inlined_call_operand.vmem [shape: bf16[128,128], index: 8, kind: input, shape index: {}]
  %s9 = inlined_call_operand.vmem [shape: f32[1,128], index: 9, kind: input, shape index: {}]
  %s10 = inlined_call_operand.vmem [shape: bf16[128,128], index: 10, kind: input, shape index: {}]
  %s11 = inlined_call_operand.vmem [shape: f32[1,128], index: 11, kind: input, shape index: {}]
  %s12 = inlined_call_operand.vmem [shape: f32[8,128], index: 12, kind: output, shape index: {}]
  %s13 = sld [smem:[#allocation0]]
  $region54: #{resnet_forward.1} parent=0
    _
  %s15 = ssub.s32 1, %s13
  %s16 = scalar_select 0, %s15, %s13
  %s17 = sshll.u32 %s0, 4
  %s18 = int_to_ptr.vmem [resolvable:$true] %s17
  %20 = dma.vmem_to_smem %s18, 16, [#allocation3], [#allocation2]
  %21 = dma.done [#allocation2], 16
  %22 = sfence
  // Predicated region
  $region2: #{resnet_forward.1} parent=0 // pred_check
    _
  $region3: #{resnet_forward.1} parent=0 // pred_check_branch
    %24 = sbr.rel (0) target = $region5
  $region4: #{resnet_forward.1} parent=0 // pred_region
    _
  $region5: #{resnet_forward.1} parent=0 // pred_fallthru
    _
  // Predicated region
  $region6: #{resnet_forward.1} parent=0 // pred_check
    _
  $region7: #{resnet_forward.1} parent=0 // pred_check_branch
    %26 = sbr.rel (0) target = $region9
  $region8: #{resnet_forward.1} parent=0 // pred_region
    _
  $region9: #{resnet_forward.1} parent=0 // pred_fallthru
    _
  // Predicated region
  $region10: #{resnet_forward.1} parent=0 // pred_check
    _
  $region11: #{resnet_forward.1} parent=0 // pred_check_branch
    %28 = sbr.rel (0) target = $region13
  $region12: #{resnet_forward.1} parent=0 // pred_region
    _
  $region13: #{resnet_forward.1} parent=0 // pred_fallthru
    _
  // Predicated region
  $region14: #{resnet_forward.1} parent=0 // pred_check
    _
  $region15: #{resnet_forward.1} parent=0 // pred_check_branch
    %30 = sbr.rel (0) target = $region17
  $region16: #{resnet_forward.1} parent=0 // pred_region
    _
  $region17: #{resnet_forward.1} parent=0 // pred_fallthru
    _
  // Predicated region
  $region18: #{resnet_forward.1} parent=0 // pred_check
    _
  $region19: #{resnet_forward.1} parent=0 // pred_check_branch
    %32 = sbr.rel (0) target = $region21
  $region20: #{resnet_forward.1} parent=0 // pred_region
    _
  $region21: #{resnet_forward.1} parent=0 // pred_fallthru
    _
  // Predicated region
  $region22: #{resnet_forward.1} parent=0 // pred_check
    _
  $region23: #{resnet_forward.1} parent=0 // pred_check_branch
    %34 = sbr.rel (0) target = $region25
  $region24: #{resnet_forward.1} parent=0 // pred_region
    _
  $region25: #{resnet_forward.1} parent=0 // pred_fallthru
    _
  // Predicated region
  $region26: #{resnet_forward.1} parent=0 // pred_check
    _
  $region27: #{resnet_forward.1} parent=0 // pred_check_branch
    %36 = sbr.rel (0) target = $region29
  $region28: #{resnet_forward.1} parent=0 // pred_region
    _
  $region29: #{resnet_forward.1} parent=0 // pred_fallthru
    _
  // Predicated region
  $region30: #{resnet_forward.1} parent=0 // pred_check
    _
  $region31: #{resnet_forward.1} parent=0 // pred_check_branch
    %38 = sbr.rel (0) target = $region33
  $region32: #{resnet_forward.1} parent=0 // pred_region
    _
  $region33: #{resnet_forward.1} parent=0 // pred_fallthru
    _
  // Predicated region
  $region34: #{resnet_forward.1} parent=0 // pred_check
    _
  $region35: #{resnet_forward.1} parent=0 // pred_check_branch
    %40 = sbr.rel (0) target = $region37
  $region36: #{resnet_forward.1} parent=0 // pred_region
    _
  $region37: #{resnet_forward.1} parent=0 // pred_fallthru
    _
  // Predicated region
  $region38: #{resnet_forward.1} parent=0 // pred_check
    _
  $region39: #{resnet_forward.1} parent=0 // pred_check_branch
    %42 = sbr.rel (0) target = $region41
  $region40: #{resnet_forward.1} parent=0 // pred_region
    _
  $region41: #{resnet_forward.1} parent=0 // pred_fallthru
    _
  // Predicated region
  $region42: #{resnet_forward.1} parent=0 // pred_check
    _
  $region43: #{resnet_forward.1} parent=0 // pred_check_branch
    %44 = sbr.rel (0) target = $region45
  $region44: #{resnet_forward.1} parent=0 // pred_region
    _
  $region45: #{resnet_forward.1} parent=0 // pred_fallthru
    _
  %v46 = vld [vmem:[%s1] sm:$0xff]
  %v47 = vld [vmem:[%s2] sm:$0xf]
  %v48 = vld [vmem:[%s2 + $0x4] sm:$0xf]
  %v49 = vld [vmem:[%s2 + $0x8] sm:$0xf]
  %v50 = vld [vmem:[%s2 + $0xc] sm:$0xf]
  %v51 = vld [vmem:[%s2 + $0x10] sm:$0xf]
  %v52 = vld [vmem:[%s2 + $0x14] sm:$0xf]
  %v53 = vld [vmem:[%s2 + $0x18] sm:$0xf]
  %v54 = vld [vmem:[%s2 + $0x1c] sm:$0xf]
  %v55 = vld [vmem:[%s2 + $0x20] sm:$0xf]
  %v56 = vld [vmem:[%s2 + $0x24] sm:$0xf]
  %v57 = vld [vmem:[%s2 + $0x28] sm:$0xf]
  %v58 = vld [vmem:[%s2 + $0x2c] sm:$0xf]
  %v59 = vld [vmem:[%s2 + $0x30] sm:$0xf]
  %v60 = vld [vmem:[%s2 + $0x34] sm:$0xf]
  %v61 = vld [vmem:[%s2 + $0x38] sm:$0xf]
  %v62 = vld [vmem:[%s2 + $0x3c] sm:$0xf]
  %v63 = vld [vmem:[%s3] sm:$0x1]
  %v64 = vpack.c.bf16 %v46, %v46
  %v66 = vlaneseq
  %v67 = vshrl.u32 %v66, 7
  %v68 = vsub.s32 0, %v67
  %v69 = vrot.slane %v63, %v68
  %v87 = vunpack.c.l.b16 %v47
  %v88 = vunpack.c.l.b16 %v48
  %v89 = vunpack.c.l.b16 %v49
  %v90 = vunpack.c.l.b16 %v50
  %v91 = vunpack.c.l.b16 %v51
  %v92 = vunpack.c.l.b16 %v52
  %v93 = vunpack.c.l.b16 %v53
  %v94 = vunpack.c.l.b16 %v54
  %v95 = vunpack.c.l.b16 %v55
  %v96 = vunpack.c.l.b16 %v56
  %v97 = vunpack.c.l.b16 %v57
  %v98 = vunpack.c.l.b16 %v58
  %v99 = vunpack.c.l.b16 %v59
  %v100 = vunpack.c.l.b16 %v60
  %v101 = vunpack.c.l.b16 %v61
  %v102 = vunpack.c.l.b16 %v62
  %v103 = vpack.c.b16 %v88, %v87
  %v104 = vpack.c.b16 %v90, %v89
  %v105 = vpack.c.b16 %v92, %v91
  %v106 = vpack.c.b16 %v94, %v93
  %v107 = vpack.c.b16 %v96, %v95
  %v108 = vpack.c.b16 %v98, %v97
  %v109 = vpack.c.b16 %v100, %v99
  %v110 = vpack.c.b16 %v102, %v101
  %119 = vmatprep.subr.bf16.mxu0 0
  %120 = vmatpush1.bf16.msra.mxu0 %v103
  %121 = vmatprep.subr.bf16.mxu0 0
  %122 = vmatpush1.bf16.msra.mxu0 %v104
  %123 = vmatprep.subr.bf16.mxu0 0
  %124 = vmatpush1.bf16.msra.mxu0 %v105
  %125 = vmatprep.subr.bf16.mxu0 0
  %126 = vmatpush1.bf16.msra.mxu0 %v106
  %127 = vmatprep.subr.bf16.mxu0 0
  %128 = vmatpush1.bf16.msra.mxu0 %v107
  %129 = vmatprep.subr.bf16.mxu0 0
  %130 = vmatpush1.bf16.msra.mxu0 %v108
  %131 = vmatprep.subr.bf16.mxu0 0
  %132 = vmatpush1.bf16.msra.mxu0 %v109
  %133 = vmatprep.subr.bf16.mxu0 0
  %134 = vmatpush1.bf16.msra.mxu0 %v110
  %135 = vmatprep.subr.bf16.mxu0 0
  %136 = vmatpush1.bf16.msra.mxu0 0
  %137 = vmatprep.subr.bf16.mxu0 0
  %138 = vmatpush1.bf16.msra.mxu0 0
  %139 = vmatprep.subr.bf16.mxu0 0
  %140 = vmatpush1.bf16.msra.mxu0 0
  %141 = vmatprep.subr.bf16.mxu0 0
  %142 = vmatpush1.bf16.msra.mxu0 0
  %143 = vmatprep.subr.bf16.mxu0 0
  %144 = vmatpush1.bf16.msra.mxu0 0
  %145 = vmatprep.subr.bf16.mxu0 0
  %146 = vmatpush1.bf16.msra.mxu0 0
  %147 = vmatprep.subr.bf16.mxu0 0
  %148 = vmatpush1.bf16.msra.mxu0 0
  %149 = vmatprep.subr.bf16.mxu0 0
  %150 = vmatpush1.bf16.msra.mxu0 0
  %151 = vmatprep.mubr.bf16.mxu0 0
  %152 = vmatmul.mubr.bf16.gmra.mrb[0].mxu0 %v64
  %v153 = vpop.f32.mrb[0].mxu0
  %v154 = vadd.f32 %v69, %v153
  %v155 = vpop.f32.mrb[0].mxu0
  %v156 = vpop.f32.mrb[0].mxu0
  %v157 = vpop.f32.mrb[0].mxu0
  %158 = vdwg.mxu0
  %s159 = sld [smem:[#allocation3]]
  %vm160 = vcmp.gt.f32.partialorder %v154, 0.0
  %v161 = vstv %s159
  %v162 = vmul.f32 %v161, %v154
  %v163 = vsel %vm160, %v154, %v162
  %v164 = vld [vmem:[%s4] sm:$0xf]
  %v165 = vld [vmem:[%s4 + $0x4] sm:$0xf]
  %v166 = vld [vmem:[%s4 + $0x8] sm:$0xf]
  %v167 = vld [vmem:[%s4 + $0xc] sm:$0xf]
  %v168 = vld [vmem:[%s4 + $0x10] sm:$0xf]
  %v169 = vld [vmem:[%s4 + $0x14] sm:$0xf]
  %v170 = vld [vmem:[%s4 + $0x18] sm:$0xf]
  %v171 = vld [vmem:[%s4 + $0x1c] sm:$0xf]
  %v172 = vld [vmem:[%s4 + $0x20] sm:$0xf]
  %v173 = vld [vmem:[%s4 + $0x24] sm:$0xf]
  %v174 = vld [vmem:[%s4 + $0x28] sm:$0xf]
  %v175 = vld [vmem:[%s4 + $0x2c] sm:$0xf]
  %v176 = vld [vmem:[%s4 + $0x30] sm:$0xf]
  %v177 = vld [vmem:[%s4 + $0x34] sm:$0xf]
  %v178 = vld [vmem:[%s4 + $0x38] sm:$0xf]
  %v179 = vld [vmem:[%s4 + $0x3c] sm:$0xf]
  %v180 = vld [vmem:[%s5] sm:$0x1]
  %v181 = vpack.c.bf16 %v163, %v163
  %v183 = vlaneseq
  %v184 = vshrl.u32 %v183, 7
  %v185 = vsub.s32 0, %v184
  %v186 = vrot.slane %v180, %v185
  %v204 = vunpack.c.l.b16 %v164
  %v205 = vunpack.c.l.b16 %v165
  %v206 = vunpack.c.l.b16 %v166
  %v207 = vunpack.c.l.b16 %v167
  %v208 = vunpack.c.l.b16 %v168
  %v209 = vunpack.c.l.b16 %v169
  %v210 = vunpack.c.l.b16 %v170
  %v211 = vunpack.c.l.b16 %v171
  %v212 = vunpack.c.l.b16 %v172
  %v213 = vunpack.c.l.b16 %v173
  %v214 = vunpack.c.l.b16 %v174
  %v215 = vunpack.c.l.b16 %v175
  %v216 = vunpack.c.l.b16 %v176
  %v217 = vunpack.c.l.b16 %v177
  %v218 = vunpack.c.l.b16 %v178
  %v219 = vunpack.c.l.b16 %v179
  %v220 = vpack.c.b16 %v205, %v204
  %v221 = vpack.c.b16 %v207, %v206
  %v222 = vpack.c.b16 %v209, %v208
  %v223 = vpack.c.b16 %v211, %v210
  %v224 = vpack.c.b16 %v213, %v212
  %v225 = vpack.c.b16 %v215, %v214
  %v226 = vpack.c.b16 %v217, %v216
  %v227 = vpack.c.b16 %v219, %v218
  %236 = vmatprep.subr.bf16.mxu0 0
  %237 = vmatpush1.bf16.msra.mxu0 %v220
  %238 = vmatprep.subr.bf16.mxu0 0
  %239 = vmatpush1.bf16.msra.mxu0 %v221
  %240 = vmatprep.subr.bf16.mxu0 0
  %241 = vmatpush1.bf16.msra.mxu0 %v222
  %242 = vmatprep.subr.bf16.mxu0 0
  %243 = vmatpush1.bf16.msra.mxu0 %v223
  %244 = vmatprep.subr.bf16.mxu0 0
  %245 = vmatpush1.bf16.msra.mxu0 %v224
  %246 = vmatprep.subr.bf16.mxu0 0
  %247 = vmatpush1.bf16.msra.mxu0 %v225
  %248 = vmatprep.subr.bf16.mxu0 0
  %249 = vmatpush1.bf16.msra.mxu0 %v226
  %250 = vmatprep.subr.bf16.mxu0 0
  %251 = vmatpush1.bf16.msra.mxu0 %v227
  %252 = vmatprep.subr.bf16.mxu0 0
  %253 = vmatpush1.bf16.msra.mxu0 0
  %254 = vmatprep.subr.bf16.mxu0 0
  %255 = vmatpush1.bf16.msra.mxu0 0
  %256 = vmatprep.subr.bf16.mxu0 0
  %257 = vmatpush1.bf16.msra.mxu0 0
  %258 = vmatprep.subr.bf16.mxu0 0
  %259 = vmatpush1.bf16.msra.mxu0 0
  %260 = vmatprep.subr.bf16.mxu0 0
  %261 = vmatpush1.bf16.msra.mxu0 0
  %262 = vmatprep.subr.bf16.mxu0 0
  %263 = vmatpush1.bf16.msra.mxu0 0
  %264 = vmatprep.subr.bf16.mxu0 0
  %265 = vmatpush1.bf16.msra.mxu0 0
  %266 = vmatprep.subr.bf16.mxu0 0
  %267 = vmatpush1.bf16.msra.mxu0 0
  %268 = vmatprep.mubr.bf16.mxu0 0
  %269 = vmatmul.mubr.bf16.gmra.mrb[0].mxu0 %v181
  %v270 = vpop.f32.mrb[0].mxu0
  %v271 = vadd.f32 %v186, %v270
  %v272 = vpop.f32.mrb[0].mxu0
  %v273 = vpop.f32.mrb[0].mxu0
  %v274 = vpop.f32.mrb[0].mxu0
  %275 = vdwg.mxu0
  %s276 = sld [smem:[#allocation3 + $0x1]]
  %vm277 = vcmp.gt.f32.partialorder %v271, 0.0
  %v278 = vstv %s276
  %v279 = vmul.f32 %v278, %v271
  %v280 = vsel %vm277, %v271, %v279
  %v281 = vld [vmem:[%s6] sm:$0xf]
  %v282 = vld [vmem:[%s6 + $0x4] sm:$0xf]
  %v283 = vld [vmem:[%s6 + $0x8] sm:$0xf]
  %v284 = vld [vmem:[%s6 + $0xc] sm:$0xf]
  %v285 = vld [vmem:[%s6 + $0x10] sm:$0xf]
  %v286 = vld [vmem:[%s6 + $0x14] sm:$0xf]
  %v287 = vld [vmem:[%s6 + $0x18] sm:$0xf]
  %v288 = vld [vmem:[%s6 + $0x1c] sm:$0xf]
  %v289 = vld [vmem:[%s6 + $0x20] sm:$0xf]
  %v290 = vld [vmem:[%s6 + $0x24] sm:$0xf]
  %v291 = vld [vmem:[%s6 + $0x28] sm:$0xf]
  %v292 = vld [vmem:[%s6 + $0x2c] sm:$0xf]
  %v293 = vld [vmem:[%s6 + $0x30] sm:$0xf]
  %v294 = vld [vmem:[%s6 + $0x34] sm:$0xf]
  %v295 = vld [vmem:[%s6 + $0x38] sm:$0xf]
  %v296 = vld [vmem:[%s6 + $0x3c] sm:$0xf]
  %v297 = vld [vmem:[%s7] sm:$0x1]
  %v298 = vpack.c.bf16 %v280, %v280
  %v300 = vlaneseq
  %v301 = vshrl.u32 %v300, 7
  %v302 = vsub.s32 0, %v301
  %v303 = vrot.slane %v297, %v302
  %v321 = vunpack.c.l.b16 %v281
  %v322 = vunpack.c.l.b16 %v282
  %v323 = vunpack.c.l.b16 %v283
  %v324 = vunpack.c.l.b16 %v284
  %v325 = vunpack.c.l.b16 %v285
  %v326 = vunpack.c.l.b16 %v286
  %v327 = vunpack.c.l.b16 %v287
  %v328 = vunpack.c.l.b16 %v288
  %v329 = vunpack.c.l.b16 %v289
  %v330 = vunpack.c.l.b16 %v290
  %v331 = vunpack.c.l.b16 %v291
  %v332 = vunpack.c.l.b16 %v292
  %v333 = vunpack.c.l.b16 %v293
  %v334 = vunpack.c.l.b16 %v294
  %v335 = vunpack.c.l.b16 %v295
  %v336 = vunpack.c.l.b16 %v296
  %v337 = vpack.c.b16 %v322, %v321
  %v338 = vpack.c.b16 %v324, %v323
  %v339 = vpack.c.b16 %v326, %v325
  %v340 = vpack.c.b16 %v328, %v327
  %v341 = vpack.c.b16 %v330, %v329
  %v342 = vpack.c.b16 %v332, %v331
  %v343 = vpack.c.b16 %v334, %v333
  %v344 = vpack.c.b16 %v336, %v335
  %353 = vmatprep.subr.bf16.mxu0 0
  %354 = vmatpush1.bf16.msra.mxu0 %v337
  %355 = vmatprep.subr.bf16.mxu0 0
  %356 = vmatpush1.bf16.msra.mxu0 %v338
  %357 = vmatprep.subr.bf16.mxu0 0
  %358 = vmatpush1.bf16.msra.mxu0 %v339
  %359 = vmatprep.subr.bf16.mxu0 0
  %360 = vmatpush1.bf16.msra.mxu0 %v340
  %361 = vmatprep.subr.bf16.mxu0 0
  %362 = vmatpush1.bf16.msra.mxu0 %v341
  %363 = vmatprep.subr.bf16.mxu0 0
  %364 = vmatpush1.bf16.msra.mxu0 %v342
  %365 = vmatprep.subr.bf16.mxu0 0
  %366 = vmatpush1.bf16.msra.mxu0 %v343
  %367 = vmatprep.subr.bf16.mxu0 0
  %368 = vmatpush1.bf16.msra.mxu0 %v344
  %369 = vmatprep.subr.bf16.mxu0 0
  %370 = vmatpush1.bf16.msra.mxu0 0
  %371 = vmatprep.subr.bf16.mxu0 0
  %372 = vmatpush1.bf16.msra.mxu0 0
  %373 = vmatprep.subr.bf16.mxu0 0
  %374 = vmatpush1.bf16.msra.mxu0 0
  %375 = vmatprep.subr.bf16.mxu0 0
  %376 = vmatpush1.bf16.msra.mxu0 0
  %377 = vmatprep.subr.bf16.mxu0 0
  %378 = vmatpush1.bf16.msra.mxu0 0
  %379 = vmatprep.subr.bf16.mxu0 0
  %380 = vmatpush1.bf16.msra.mxu0 0
  %381 = vmatprep.subr.bf16.mxu0 0
  %382 = vmatpush1.bf16.msra.mxu0 0
  %383 = vmatprep.subr.bf16.mxu0 0
  %384 = vmatpush1.bf16.msra.mxu0 0
  %385 = vmatprep.mubr.bf16.mxu0 0
  %386 = vmatmul.mubr.bf16.gmra.mrb[0].mxu0 %v298
  %v387 = vpop.f32.mrb[0].mxu0
  %v388 = vadd.f32 %v303, %v387
  %v389 = vpop.f32.mrb[0].mxu0
  %v390 = vpop.f32.mrb[0].mxu0
  %v391 = vpop.f32.mrb[0].mxu0
  %392 = vdwg.mxu0
  %s393 = sld [smem:[#allocation3 + $0x2]]
  %vm394 = vcmp.gt.f32.partialorder %v388, 0.0
  %v395 = vstv %s393
  %v396 = vmul.f32 %v395, %v388
  %v397 = vsel %vm394, %v388, %v396
  %v398 = vld [vmem:[%s8] sm:$0xf]
  %v399 = vld [vmem:[%s8 + $0x4] sm:$0xf]
  %v400 = vld [vmem:[%s8 + $0x8] sm:$0xf]
  %v401 = vld [vmem:[%s8 + $0xc] sm:$0xf]
  %v402 = vld [vmem:[%s8 + $0x10] sm:$0xf]
  %v403 = vld [vmem:[%s8 + $0x14] sm:$0xf]
  %v404 = vld [vmem:[%s8 + $0x18] sm:$0xf]
  %v405 = vld [vmem:[%s8 + $0x1c] sm:$0xf]
  %v406 = vld [vmem:[%s8 + $0x20] sm:$0xf]
  %v407 = vld [vmem:[%s8 + $0x24] sm:$0xf]
  %v408 = vld [vmem:[%s8 + $0x28] sm:$0xf]
  %v409 = vld [vmem:[%s8 + $0x2c] sm:$0xf]
  %v410 = vld [vmem:[%s8 + $0x30] sm:$0xf]
  %v411 = vld [vmem:[%s8 + $0x34] sm:$0xf]
  %v412 = vld [vmem:[%s8 + $0x38] sm:$0xf]
  %v413 = vld [vmem:[%s8 + $0x3c] sm:$0xf]
  %v414 = vld [vmem:[%s9] sm:$0x1]
  %v415 = vpack.c.bf16 %v397, %v397
  %v417 = vlaneseq
  %v418 = vshrl.u32 %v417, 7
  %v419 = vsub.s32 0, %v418
  %v420 = vrot.slane %v414, %v419
  %v438 = vunpack.c.l.b16 %v398
  %v439 = vunpack.c.l.b16 %v399
  %v440 = vunpack.c.l.b16 %v400
  %v441 = vunpack.c.l.b16 %v401
  %v442 = vunpack.c.l.b16 %v402
  %v443 = vunpack.c.l.b16 %v403
  %v444 = vunpack.c.l.b16 %v404
  %v445 = vunpack.c.l.b16 %v405
  %v446 = vunpack.c.l.b16 %v406
  %v447 = vunpack.c.l.b16 %v407
  %v448 = vunpack.c.l.b16 %v408
  %v449 = vunpack.c.l.b16 %v409
  %v450 = vunpack.c.l.b16 %v410
  %v451 = vunpack.c.l.b16 %v411
  %v452 = vunpack.c.l.b16 %v412
  %v453 = vunpack.c.l.b16 %v413
  %v454 = vpack.c.b16 %v439, %v438
  %v455 = vpack.c.b16 %v441, %v440
  %v456 = vpack.c.b16 %v443, %v442
  %v457 = vpack.c.b16 %v445, %v444
  %v458 = vpack.c.b16 %v447, %v446
  %v459 = vpack.c.b16 %v449, %v448
  %v460 = vpack.c.b16 %v451, %v450
  %v461 = vpack.c.b16 %v453, %v452
  %470 = vmatprep.subr.bf16.mxu0 0
  %471 = vmatpush1.bf16.msra.mxu0 %v454
  %472 = vmatprep.subr.bf16.mxu0 0
  %473 = vmatpush1.bf16.msra.mxu0 %v455
  %474 = vmatprep.subr.bf16.mxu0 0
  %475 = vmatpush1.bf16.msra.mxu0 %v456
  %476 = vmatprep.subr.bf16.mxu0 0
  %477 = vmatpush1.bf16.msra.mxu0 %v457
  %478 = vmatprep.subr.bf16.mxu0 0
  %479 = vmatpush1.bf16.msra.mxu0 %v458
  %480 = vmatprep.subr.bf16.mxu0 0
  %481 = vmatpush1.bf16.msra.mxu0 %v459
  %482 = vmatprep.subr.bf16.mxu0 0
  %483 = vmatpush1.bf16.msra.mxu0 %v460
  %484 = vmatprep.subr.bf16.mxu0 0
  %485 = vmatpush1.bf16.msra.mxu0 %v461
  %486 = vmatprep.subr.bf16.mxu0 0
  %487 = vmatpush1.bf16.msra.mxu0 0
  %488 = vmatprep.subr.bf16.mxu0 0
  %489 = vmatpush1.bf16.msra.mxu0 0
  %490 = vmatprep.subr.bf16.mxu0 0
  %491 = vmatpush1.bf16.msra.mxu0 0
  %492 = vmatprep.subr.bf16.mxu0 0
  %493 = vmatpush1.bf16.msra.mxu0 0
  %494 = vmatprep.subr.bf16.mxu0 0
  %495 = vmatpush1.bf16.msra.mxu0 0
  %496 = vmatprep.subr.bf16.mxu0 0
  %497 = vmatpush1.bf16.msra.mxu0 0
  %498 = vmatprep.subr.bf16.mxu0 0
  %499 = vmatpush1.bf16.msra.mxu0 0
  %500 = vmatprep.subr.bf16.mxu0 0
  %501 = vmatpush1.bf16.msra.mxu0 0
  %502 = vmatprep.mubr.bf16.mxu0 0
  %503 = vmatmul.mubr.bf16.gmra.mrb[0].mxu0 %v415
  %v504 = vpop.f32.mrb[0].mxu0
  %v505 = vadd.f32 %v420, %v504
  %v506 = vpop.f32.mrb[0].mxu0
  %v507 = vpop.f32.mrb[0].mxu0
  %v508 = vpop.f32.mrb[0].mxu0
  %509 = vdwg.mxu0
  %s510 = sld [smem:[#allocation3 + $0x3]]
  %vm511 = vcmp.gt.f32.partialorder %v505, 0.0
  %v512 = vstv %s510
  %v513 = vmul.f32 %v512, %v505
  %v514 = vsel %vm511, %v505, %v513
  %v515 = vld [vmem:[%s10] sm:$0xf]
  %v516 = vld [vmem:[%s10 + $0x4] sm:$0xf]
  %v517 = vld [vmem:[%s10 + $0x8] sm:$0xf]
  %v518 = vld [vmem:[%s10 + $0xc] sm:$0xf]
  %v519 = vld [vmem:[%s10 + $0x10] sm:$0xf]
  %v520 = vld [vmem:[%s10 + $0x14] sm:$0xf]
  %v521 = vld [vmem:[%s10 + $0x18] sm:$0xf]
  %v522 = vld [vmem:[%s10 + $0x1c] sm:$0xf]
  %v523 = vld [vmem:[%s10 + $0x20] sm:$0xf]
  %v524 = vld [vmem:[%s10 + $0x24] sm:$0xf]
  %v525 = vld [vmem:[%s10 + $0x28] sm:$0xf]
  %v526 = vld [vmem:[%s10 + $0x2c] sm:$0xf]
  %v527 = vld [vmem:[%s10 + $0x30] sm:$0xf]
  %v528 = vld [vmem:[%s10 + $0x34] sm:$0xf]
  %v529 = vld [vmem:[%s10 + $0x38] sm:$0xf]
  %v530 = vld [vmem:[%s10 + $0x3c] sm:$0xf]
  %v531 = vld [vmem:[%s11] sm:$0x1]
  %v532 = vpack.c.bf16 %v514, %v514
  %v534 = vlaneseq
  %v535 = vshrl.u32 %v534, 7
  %v536 = vsub.s32 0, %v535
  %v537 = vrot.slane %v531, %v536
  %v555 = vunpack.c.l.b16 %v515
  %v556 = vunpack.c.l.b16 %v516
  %v557 = vunpack.c.l.b16 %v517
  %v558 = vunpack.c.l.b16 %v518
  %v559 = vunpack.c.l.b16 %v519
  %v560 = vunpack.c.l.b16 %v520
  %v561 = vunpack.c.l.b16 %v521
  %v562 = vunpack.c.l.b16 %v522
  %v563 = vunpack.c.l.b16 %v523
  %v564 = vunpack.c.l.b16 %v524
  %v565 = vunpack.c.l.b16 %v525
  %v566 = vunpack.c.l.b16 %v526
  %v567 = vunpack.c.l.b16 %v527
  %v568 = vunpack.c.l.b16 %v528
  %v569 = vunpack.c.l.b16 %v529
  %v570 = vunpack.c.l.b16 %v530
  %v571 = vpack.c.b16 %v556, %v555
  %v572 = vpack.c.b16 %v558, %v557
  %v573 = vpack.c.b16 %v560, %v559
  %v574 = vpack.c.b16 %v562, %v561
  %v575 = vpack.c.b16 %v564, %v563
  %v576 = vpack.c.b16 %v566, %v565
  %v577 = vpack.c.b16 %v568, %v567
  %v578 = vpack.c.b16 %v570, %v569
  %587 = vmatprep.subr.bf16.mxu0 0
  %588 = vmatpush1.bf16.msra.mxu0 %v571
  %589 = vmatprep.subr.bf16.mxu0 0
  %590 = vmatpush1.bf16.msra.mxu0 %v572
  %591 = vmatprep.subr.bf16.mxu0 0
  %592 = vmatpush1.bf16.msra.mxu0 %v573
  %593 = vmatprep.subr.bf16.mxu0 0
  %594 = vmatpush1.bf16.msra.mxu0 %v574
  %595 = vmatprep.subr.bf16.mxu0 0
  %596 = vmatpush1.bf16.msra.mxu0 %v575
  %597 = vmatprep.subr.bf16.mxu0 0
  %598 = vmatpush1.bf16.msra.mxu0 %v576
  %599 = vmatprep.subr.bf16.mxu0 0
  %600 = vmatpush1.bf16.msra.mxu0 %v577
  %601 = vmatprep.subr.bf16.mxu0 0
  %602 = vmatpush1.bf16.msra.mxu0 %v578
  %603 = vmatprep.subr.bf16.mxu0 0
  %604 = vmatpush1.bf16.msra.mxu0 0
  %605 = vmatprep.subr.bf16.mxu0 0
  %606 = vmatpush1.bf16.msra.mxu0 0
  %607 = vmatprep.subr.bf16.mxu0 0
  %608 = vmatpush1.bf16.msra.mxu0 0
  %609 = vmatprep.subr.bf16.mxu0 0
  %610 = vmatpush1.bf16.msra.mxu0 0
  %611 = vmatprep.subr.bf16.mxu0 0
  %612 = vmatpush1.bf16.msra.mxu0 0
  %613 = vmatprep.subr.bf16.mxu0 0
  %614 = vmatpush1.bf16.msra.mxu0 0
  %615 = vmatprep.subr.bf16.mxu0 0
  %616 = vmatpush1.bf16.msra.mxu0 0
  %617 = vmatprep.subr.bf16.mxu0 0
  %618 = vmatpush1.bf16.msra.mxu0 0
  %619 = vmatprep.mubr.bf16.mxu0 0
  %620 = vmatmul.mubr.bf16.gmra.mrb[0].mxu0 %v532
  %v621 = vpop.f32.mrb[0].mxu0
  %v622 = vadd.f32 %v537, %v621
  %v623 = vpop.f32.mrb[0].mxu0
  %v624 = vpop.f32.mrb[0].mxu0
  %v625 = vpop.f32.mrb[0].mxu0
  %626 = vdwg.mxu0
  %627 = vst [vmem:[%s12] sm:$0xff] %v622
  // Predicated region
  $region46: #{resnet_forward.1} parent=0 // pred_check
    _
  $region47: #{resnet_forward.1} parent=0 // pred_check_branch
    %629 = sbr.rel (0) target = $region49
  $region48: #{resnet_forward.1} parent=0 // pred_region
    _
  $region49: #{resnet_forward.1} parent=0 // pred_fallthru
    _
  // Predicated region
  $region50: #{resnet_forward.1} parent=0 // pred_check
    _
  $region51: #{resnet_forward.1} parent=0 // pred_check_branch
    %631 = sbr.rel (0) target = $region53
  $region52: #{resnet_forward.1} parent=0 // pred_region
    _
  $region53: #{resnet_forward.1} parent=0 // pred_fallthru
    _

</llo_original>
